<compile_context>
chip_gen: v5e
topology: v5e:2x2
jax: 0.10.0
libtpu: 0.0.40
codegen_flags: <defaults>
</compile_context>

<pallas_src>
import jax
import jax.numpy as jnp
import numpy as np
from jax.experimental import pallas as pl
from jax.experimental.pallas import tpu as pltpu


def _ddfm_kernel(p_ref, i_ref, d_ref, w_ref, bn1_ref, b2_ref, o_ref, h_ref):
    # Blocks: p/i/d (1, C, T); w (Cout, 2C) mxu dtype; bn1 (4, C, 1) f32
    # packed [a1p, b1p, a1i, b1i]; b2 (Cout, 1) f32; out (1, Cout, T);
    # h_ref scratch (2C, T) mxu dtype.
    C = p_ref.shape[1]

    p = p_ref[0].astype(jnp.float32)          # (C, T), channels on sublanes
    i = i_ref[0].astype(jnp.float32)
    d = d_ref[0].astype(jnp.float32)

    a1p = bn1_ref[0]                          # (C, 1) lane-broadcast columns
    b1p = bn1_ref[1]
    a1i = bn1_ref[2]
    b1i = bn1_ref[3]

    # sigmoid via EUP exp + approx reciprocal (both off the VALU slot).
    edge = pl.reciprocal(1.0 + jnp.exp(-d), approx=True)
    xp = (1.0 - edge) * i + p                 # conv_p branch input
    xi = i + edge * p                         # conv_i branch input

    # BN1 (folded affine) + ReLU, f32.
    hp = jnp.maximum(a1p * xp + b1p, 0.0)
    hi = jnp.maximum(a1i * xi + b1i, 0.0)

    # Write both halves straight into the persistent (2C, T) scratch (no
    # jnp.concatenate copy); one fused K=2C MXU matmul with f32 accumulation.
    # BN2 scales already folded into w, the two BN2 biases pre-summed in b2.
    h_ref[0:C, :] = hp.astype(h_ref.dtype)
    h_ref[C:2 * C, :] = hi.astype(h_ref.dtype)
    y = jnp.dot(w_ref[...], h_ref[...], preferred_element_type=jnp.float32)

    o_ref[0] = (y + b2_ref[...]).astype(o_ref.dtype)


def _fold_bn(gamma, beta, mean, var, eps=1e-5):
    a = gamma / jnp.sqrt(var + eps)
    b = beta - mean * a
    return a, b


def _vmem_plan():
    """Generation-aware VMEM numbers: (capacity, vmem_limit, tile_budget)."""
    try:
        cap = int(pltpu.get_tpu_info().vmem_capacity_bytes)
    except Exception:
        cap = 64 * 1024 * 1024                 # conservative: v7x per-TC
    vmem_limit = min(cap * 3 // 4, 64 * 1024 * 1024)   # ~25% headroom, <=64MiB
    tile_budget = vmem_limit * 3 // 4
    return cap, vmem_limit, tile_budget


def _pick_tile(hw, target, max_t):
    """Return (T, hw_pad): lane-dense pixel tile (multiple of 128, divides
    hw_pad) and the padded H*W.  Never falls back to a non-128-aligned full
    row, so output stores stay unmasked and pipelining stays intact."""
    t_cap = max(128, (min(target, max_t) // 128) * 128)
    hw128 = -(-hw // 128) * 128
    if hw128 <= t_cap:
        return hw128, hw128
    # Prefer a large divisor of the 128-aligned length (no extra padding).
    for k in range(t_cap // 128, 0, -1):
        t = 128 * k
        if hw128 % t == 0 and 2 * t >= t_cap:
            return t, hw128
    # Otherwise pad H*W up to a multiple of the full-size tile.
    return t_cap, -(-hw // t_cap) * t_cap


def ddfmv2_forward(p, i, d, params, *, pixel_tile=None,
                   mxu_dtype=jnp.bfloat16, out_dtype=None):
    """p, i, d: NCHW arrays of identical shape (N, Cin, H, W).

    Inputs are used at their given dtype (pass bf16 from the producer for the
    bandwidth win -- no cast is inserted here); output dtype defaults to the
    input dtype."""
    N, Cin, H, W = p.shape
    Cout = params["w_p"].shape[0]
    HW = H * W
    out_dtype = p.dtype if out_dtype is None else out_dtype

    # Fold the four BatchNorms into per-channel affines (f32).
    a1p, b1p = _fold_bn(params["bn1p_g"], params["bn1p_b"],
                        params["bn1p_m"], params["bn1p_v"])
    a1i, b1i = _fold_bn(params["bn1i_g"], params["bn1i_b"],
                        params["bn1i_m"], params["bn1i_v"])
    a2p, b2p = _fold_bn(params["bn2p_g"], params["bn2p_b"],
                        params["bn2p_m"], params["bn2p_v"])
    a2i, b2i = _fold_bn(params["bn2i_g"], params["bn2i_b"],
                        params["bn2i_m"], params["bn2i_v"])

    # Fold BN2 scales into the conv weights (in f32); pre-sum the BN2 biases.
    wp = params["w_p"].astype(jnp.float32) * a2p[:, None]     # (Cout, Cin)
    wi = params["w_i"].astype(jnp.float32) * a2i[:, None]
    b2 = (b2p + b2i).reshape(Cout, 1).astype(jnp.float32)

    # Channels-first, pixels flattened onto the lane axis (pure reshape).
    p3 = p.reshape(N, Cin, HW)
    i3 = i.reshape(N, Cin, HW)
    d3 = d.reshape(N, Cin, HW)

    # Pad channels to the MXU-operand sublane granule (16 for bf16) so the
    # in-kernel (2C, T) operand and the scratch half-writes stay tile-aligned.
    # No-op at real PIDNet widths (64 / 128 / 256).
    gran = max(8, 32 // np.dtype(mxu_dtype).itemsize)
    C = -(-Cin // gran) * gran
    if C != Cin:
        pc = C - Cin
        pad3 = ((0, 0), (0, pc), (0, 0))
        p3 = jnp.pad(p3, pad3)
        i3 = jnp.pad(i3, pad3)
        d3 = jnp.pad(d3, pad3)
        a1p = jnp.pad(a1p, (0, pc))
        b1p = jnp.pad(b1p, (0, pc))
        a1i = jnp.pad(a1i, (0, pc))
        b1i = jnp.pad(b1i, (0, pc))
        wp = jnp.pad(wp, ((0, 0), (0, pc)))
        wi = jnp.pad(wi, ((0, 0), (0, pc)))

    w_fused = jnp.concatenate([wp, wi], axis=1).astype(mxu_dtype)   # (Cout, 2C)
    # BN1 columns packed into one small input: (4, C, 1) = [a1p, b1p, a1i, b1i]
    bn1 = jnp.stack([a1p, b1p, a1i, b1i], axis=0).reshape(4, C, 1)
    bn1 = bn1.astype(jnp.float32)

    # Generation-aware tile sizing (v7x: 64 MiB VMEM/TC; v5e/v6e: 128 MiB).
    cap, vmem_limit, tile_budget = _vmem_plan()
    if pixel_tile is None:
        pixel_tile = 4096 if cap >= 96 * 1024 * 1024 else 2048

    in_b = np.dtype(p.dtype).itemsize
    out_b = np.dtype(out_dtype).itemsize
    h_b = np.dtype(mxu_dtype).itemsize
    # Per-pixel working-set bytes: double-buffered p/i/d + output blocks,
    # the (2C, T) scratch, and the f32 temporaries (edge/xp/xi/hp/hi + y).
    bytes_per_pixel = (2 * 3 * C * in_b
                       + 2 * Cout * out_b
                       + 2 * C * h_b
                       + 4 * (6 * C + 2 * Cout))
    max_t = max(128, (tile_budget // bytes_per_pixel) // 128 * 128)
    T, HWp = _pick_tile(HW, pixel_tile, max_t)

    if HWp != HW:
        padhw = ((0, 0), (0, 0), (0, HWp - HW))
        p3 = jnp.pad(p3, padhw)
        i3 = jnp.pad(i3, padhw)
        d3 = jnp.pad(d3, padhw)

    grid = (N, HWp // T)

    pix_spec = pl.BlockSpec((1, C, T), lambda n, t: (n, 0, t))
    w_spec = pl.BlockSpec((Cout, 2 * C), lambda n, t: (0, 0))
    bn1_spec = pl.BlockSpec((4, C, 1), lambda n, t: (0, 0, 0))
    b2_spec = pl.BlockSpec((Cout, 1), lambda n, t: (0, 0))
    out_spec = pl.BlockSpec((1, Cout, T), lambda n, t: (n, 0, t))

    cost = pl.CostEstimate(
        flops=int(2 * N * HWp * (2 * C) * Cout + 10 * N * HWp * C),
        transcendentals=int(N * HWp * C),
        bytes_accessed=int(in_b * 3 * N * HWp * C + out_b * N * HWp * Cout
                           + h_b * Cout * 2 * C),
    )

    out3 = pl.pallas_call(
        _ddfm_kernel,
        out_shape=jax.ShapeDtypeStruct((N, Cout, HWp), out_dtype),
        grid_spec=pltpu.PrefetchScalarGridSpec(
            num_scalar_prefetch=0,
            grid=grid,
            in_specs=[pix_spec, pix_spec, pix_spec,
                      w_spec, bn1_spec, b2_spec],
            out_specs=out_spec,
            scratch_shapes=[pltpu.VMEM((2 * C, T), mxu_dtype)],
        ),
        compiler_params=pltpu.CompilerParams(
            dimension_semantics=("parallel", "parallel"),
            vmem_limit_bytes=int(vmem_limit)),
        cost_estimate=cost,
    )(p3, i3, d3, w_fused, bn1, b2)

    if HWp != HW:
        out3 = out3[:, :, :HW]
    return out3.reshape(N, Cout, H, W)


def ddfmv2_reference(p, i, d, params):
    """Pure-JAX f32 reference (same inference-mode BN folding)."""
    edge = jax.nn.sigmoid(d.astype(jnp.float32))
    pf = p.astype(jnp.float32)
    if_ = i.astype(jnp.float32)
    xp = (1.0 - edge) * if_ + pf
    xi = if_ + edge * pf

    def branch(x, a1, b1, w, a2, b2):
        h = jnp.maximum(a1[None, :, None, None] * x + b1[None, :, None, None],
                        0.0)
        y = jnp.einsum("nchw,oc->nohw", h, w)
        return a2[None, :, None, None] * y + b2[None, :, None, None]

    a1p, b1p = _fold_bn(params["bn1p_g"], params["bn1p_b"],
                        params["bn1p_m"], params["bn1p_v"])
    a1i, b1i = _fold_bn(params["bn1i_g"], params["bn1i_b"],
                        params["bn1i_m"], params["bn1i_v"])
    a2p, b2p = _fold_bn(params["bn2p_g"], params["bn2p_b"],
                        params["bn2p_m"], params["bn2p_v"])
    a2i, b2i = _fold_bn(params["bn2i_g"], params["bn2i_b"],
                        params["bn2i_m"], params["bn2i_v"])

    return (branch(xp, a1p, b1p, params["w_p"], a2p, b2p)
            + branch(xi, a1i, b1i, params["w_i"], a2i, b2i))


def init_params(key, in_channels, out_channels):
    ks = jax.random.split(key, 6)

    def bn(k, c):
        kg, kb, km, kv = jax.random.split(k, 4)
        return (1.0 + 0.1 * jax.random.normal(kg, (c,), jnp.float32),   # gamma
                0.1 * jax.random.normal(kb, (c,), jnp.float32),          # beta
                0.1 * jax.random.normal(km, (c,), jnp.float32),          # mean
                1.0 + 0.05 * jax.random.uniform(kv, (c,), jnp.float32))  # var

    bn1p = bn(ks[0], in_channels)
    bn1i = bn(ks[1], in_channels)
    bn2p = bn(ks[2], out_channels)
    bn2i = bn(ks[3], out_channels)
    w_p = 0.2 * jax.random.normal(ks[4], (out_channels, in_channels),
                                  jnp.float32)
    w_i = 0.2 * jax.random.normal(ks[5], (out_channels, in_channels),
                                  jnp.float32)
    return {
        "w_p": w_p, "w_i": w_i,
        "bn1p_g": bn1p[0], "bn1p_b": bn1p[1], "bn1p_m": bn1p[2], "bn1p_v": bn1p[3],
        "bn1i_g": bn1i[0], "bn1i_b": bn1i[1], "bn1i_m": bn1i[2], "bn1i_v": bn1i[3],
        "bn2p_g": bn2p[0], "bn2p_b": bn2p[1], "bn2p_m": bn2p[2], "bn2p_v": bn2p[3],
        "bn2i_g": bn2i[0], "bn2i_b": bn2i[1], "bn2i_m": bn2i[2], "bn2i_v": bn2i[3],
    }


if __name__ == "__main__":
    # TODO(synk): BatchNorm is modeled in inference mode (running stats),
    # matching PyTorch .eval(); training-mode batch statistics are not modeled.
    N, Cin, Cout, H, W = 2, 4, 8, 16, 16
    key = jax.random.PRNGKey(0)
    kp, ki, kd, kw = jax.random.split(key, 4)

    p = jax.random.normal(kp, (N, Cin, H, W), jnp.float32)
    i = jax.random.normal(ki, (N, Cin, H, W), jnp.float32)
    d = jax.random.normal(kd, (N, Cin, H, W), jnp.float32)
    params = init_params(kw, Cin, Cout)

    out = jax.block_until_ready(ddfmv2_forward(p, i, d, params))
    ref = ddfmv2_reference(p, i, d, params)

    assert out.shape == (N, Cout, H, W)
    # Tolerance covers the bf16 MXU matmul (f32 accumulation) and the approx
    # EUP reciprocal in the sigmoid vs an all-f32 reference.
    assert jnp.allclose(out, ref, atol=5e-2, rtol=5e-2), "mismatch vs reference"
    print("KERNEL_OK")
</pallas_src>

<mosaic_0001>
module attributes {stable_mosaic.version = 11 : i64} {
  func.func @_ddfm_kernel(%arg0: i32, %arg1: i32, %arg2: memref<1x16x256xf32, #tpu.memory_space<vmem>>, %arg3: memref<1x16x256xf32, #tpu.memory_space<vmem>>, %arg4: memref<1x16x256xf32, #tpu.memory_space<vmem>>, %arg5: memref<8x32xbf16, #tpu.memory_space<vmem>>, %arg6: memref<4x16x1xf32, #tpu.memory_space<vmem>>, %arg7: memref<8x1xf32, #tpu.memory_space<vmem>>, %arg8: memref<1x8x256xf32, #tpu.memory_space<vmem>>, %arg9: memref<32x256xbf16, #tpu.memory_space<vmem>>) attributes {dimension_semantics = [#tpu.dimension_semantics<parallel>, #tpu.dimension_semantics<parallel>], iteration_bounds = array<i64: 2, 1>, scalar_prefetch = 0 : i64, scratch_operands = 1 : i64, tpu.core_type = #tpu.core_type<tc>, window_params = [{transform_indices = @transform_0, window_bounds = array<i64: 1, 16, 256>}, {transform_indices = @transform_1, window_bounds = array<i64: 1, 16, 256>}, {transform_indices = @transform_2, window_bounds = array<i64: 1, 16, 256>}, {pipeline_mode = #tpu.pipeline_mode<synchronous>, transform_indices = @transform_3, window_bounds = array<i64: 8, 32>}, {pipeline_mode = #tpu.pipeline_mode<synchronous>, transform_indices = @transform_4, window_bounds = array<i64: 4, 16, 1>}, {pipeline_mode = #tpu.pipeline_mode<synchronous>, transform_indices = @transform_5, window_bounds = array<i64: 8, 1>}, {transform_indices = @transform_6, window_bounds = array<i64: 1, 8, 256>}]} {
    %c0 = arith.constant 0 : index
    %c0_0 = arith.constant 0 : index
    %c0_1 = arith.constant 0 : index
    %0 = vector.load %arg2[%c0, %c0_0, %c0_1] : memref<1x16x256xf32, #tpu.memory_space<vmem>>, vector<1x16x256xf32>
    %1 = vector.shape_cast %0 : vector<1x16x256xf32> to vector<16x256xf32>
    %c0_2 = arith.constant 0 : index
    %c0_3 = arith.constant 0 : index
    %c0_4 = arith.constant 0 : index
    %2 = vector.load %arg3[%c0_2, %c0_3, %c0_4] : memref<1x16x256xf32, #tpu.memory_space<vmem>>, vector<1x16x256xf32>
    %3 = vector.shape_cast %2 : vector<1x16x256xf32> to vector<16x256xf32>
    %c0_5 = arith.constant 0 : index
    %c0_6 = arith.constant 0 : index
    %c0_7 = arith.constant 0 : index
    %4 = vector.load %arg4[%c0_5, %c0_6, %c0_7] : memref<1x16x256xf32, #tpu.memory_space<vmem>>, vector<1x16x256xf32>
    %5 = vector.shape_cast %4 : vector<1x16x256xf32> to vector<16x256xf32>
    %c0_8 = arith.constant 0 : index
    %c0_9 = arith.constant 0 : index
    %c0_10 = arith.constant 0 : index
    %6 = vector.load %arg6[%c0_8, %c0_9, %c0_10] : memref<4x16x1xf32, #tpu.memory_space<vmem>>, vector<1x16x1xf32>
    %7 = vector.shape_cast %6 : vector<1x16x1xf32> to vector<16x1xf32>
    %c1 = arith.constant 1 : index
    %c0_11 = arith.constant 0 : index
    %c0_12 = arith.constant 0 : index
    %8 = vector.load %arg6[%c1, %c0_11, %c0_12] : memref<4x16x1xf32, #tpu.memory_space<vmem>>, vector<1x16x1xf32>
    %9 = vector.shape_cast %8 : vector<1x16x1xf32> to vector<16x1xf32>
    %c2 = arith.constant 2 : index
    %c0_13 = arith.constant 0 : index
    %c0_14 = arith.constant 0 : index
    %10 = vector.load %arg6[%c2, %c0_13, %c0_14] : memref<4x16x1xf32, #tpu.memory_space<vmem>>, vector<1x16x1xf32>
    %11 = vector.shape_cast %10 : vector<1x16x1xf32> to vector<16x1xf32>
    %c3 = arith.constant 3 : index
    %c0_15 = arith.constant 0 : index
    %c0_16 = arith.constant 0 : index
    %12 = vector.load %arg6[%c3, %c0_15, %c0_16] : memref<4x16x1xf32, #tpu.memory_space<vmem>>, vector<1x16x1xf32>
    %13 = vector.shape_cast %12 : vector<1x16x1xf32> to vector<16x1xf32>
    %cst = arith.constant 0.000000e+00 : f32
    %14 = vector.broadcast %cst : f32 to vector<16x256xf32>
    %15 = arith.subf %14, %5 : vector<16x256xf32>
    %16 = math.exp %15 : vector<16x256xf32>
    %cst_17 = arith.constant 1.000000e+00 : f32
    %17 = vector.broadcast %cst_17 : f32 to vector<16x256xf32>
    %18 = arith.addf %17, %16 : vector<16x256xf32>
    %19 = tpu.reciprocal %18 {approx = true} : vector<16x256xf32> -> vector<16x256xf32>
    %cst_18 = arith.constant 1.000000e+00 : f32
    %20 = vector.broadcast %cst_18 : f32 to vector<16x256xf32>
    %21 = arith.subf %20, %19 : vector<16x256xf32>
    %22 = arith.mulf %21, %3 : vector<16x256xf32>
    %23 = arith.addf %22, %1 : vector<16x256xf32>
    %24 = arith.mulf %19, %1 : vector<16x256xf32>
    %25 = arith.addf %3, %24 : vector<16x256xf32>
    %26 = vector.broadcast %7 : vector<16x1xf32> to vector<16x256xf32>
    %27 = arith.mulf %26, %23 : vector<16x256xf32>
    %28 = vector.broadcast %9 : vector<16x1xf32> to vector<16x256xf32>
    %29 = arith.addf %27, %28 : vector<16x256xf32>
    %cst_19 = arith.constant 0.000000e+00 : f32
    %30 = vector.broadcast %cst_19 : f32 to vector<16x256xf32>
    %31 = arith.maximumf %29, %30 : vector<16x256xf32>
    %32 = vector.broadcast %11 : vector<16x1xf32> to vector<16x256xf32>
    %33 = arith.mulf %32, %25 : vector<16x256xf32>
    %34 = vector.broadcast %13 : vector<16x1xf32> to vector<16x256xf32>
    %35 = arith.addf %33, %34 : vector<16x256xf32>
    %cst_20 = arith.constant 0.000000e+00 : f32
    %36 = vector.broadcast %cst_20 : f32 to vector<16x256xf32>
    %37 = arith.maximumf %35, %36 : vector<16x256xf32>
    %38 = arith.truncf %31 : vector<16x256xf32> to vector<16x256xbf16>
    %c0_21 = arith.constant 0 : index
    %c0_22 = arith.constant 0 : index
    %39 = vector.load %arg9[%c0_21, %c0_22] : memref<32x256xbf16, #tpu.memory_space<vmem>>, vector<16x256xbf16>
    tpu.vector_store %arg9[%c0_21, %c0_22], %38 {strides = array<i32>} : memref<32x256xbf16, #tpu.memory_space<vmem>>, vector<16x256xbf16>,
    %40 = arith.truncf %37 : vector<16x256xf32> to vector<16x256xbf16>
    %c16 = arith.constant 16 : index
    %c0_23 = arith.constant 0 : index
    %41 = vector.load %arg9[%c16, %c0_23] : memref<32x256xbf16, #tpu.memory_space<vmem>>, vector<16x256xbf16>
    tpu.vector_store %arg9[%c16, %c0_23], %40 {strides = array<i32>} : memref<32x256xbf16, #tpu.memory_space<vmem>>, vector<16x256xbf16>,
    %c0_24 = arith.constant 0 : index
    %c0_25 = arith.constant 0 : index
    %42 = vector.load %arg5[%c0_24, %c0_25] : memref<8x32xbf16, #tpu.memory_space<vmem>>, vector<8x32xbf16>
    %c0_26 = arith.constant 0 : index
    %c0_27 = arith.constant 0 : index
    %43 = vector.load %arg9[%c0_26, %c0_27] : memref<32x256xbf16, #tpu.memory_space<vmem>>, vector<32x256xbf16>
    %cst_28 = arith.constant dense<0.000000e+00> : vector<8x256xf32>
    %44 = tpu.matmul %42, %43, %cst_28 {dimension_numbers = #tpu.dot_dimension_numbers<[1], [0], [0], [1], [0, 0, 1, 1], [], []>} : vector<8x32xbf16>, vector<32x256xbf16>, vector<8x256xf32> -> vector<8x256xf32>
    %c0_29 = arith.constant 0 : index
    %c0_30 = arith.constant 0 : index
    %45 = vector.load %arg7[%c0_29, %c0_30] : memref<8x1xf32, #tpu.memory_space<vmem>>, vector<8x1xf32>
    %46 = vector.broadcast %45 : vector<8x1xf32> to vector<8x256xf32>
    %47 = arith.addf %44, %46 : vector<8x256xf32>
    %c0_31 = arith.constant 0 : index
    %c0_32 = arith.constant 0 : index
    %c0_33 = arith.constant 0 : index
    %48 = vector.load %arg8[%c0_31, %c0_32, %c0_33] : memref<1x8x256xf32, #tpu.memory_space<vmem>>, vector<1x8x256xf32>
    %49 = vector.shape_cast %48 : vector<1x8x256xf32> to vector<8x256xf32>
    %50 = vector.shape_cast %47 : vector<8x256xf32> to vector<1x8x256xf32>
    tpu.vector_store %arg8[%c0_31, %c0_32, %c0_33], %50 {strides = array<i32>} : memref<1x8x256xf32, #tpu.memory_space<vmem>>, vector<1x8x256xf32>,
    return
  }
  func.func @transform_0(%arg0: i32, %arg1: i32) -> (i32, i32, i32) {
    %c0_i32 = arith.constant 0 : i32
    %c0_i32_0 = arith.constant 0 : i32
    return %arg0, %c0_i32, %arg1 : i32, i32, i32
  }
  func.func @transform_1(%arg0: i32, %arg1: i32) -> (i32, i32, i32) {
    %c0_i32 = arith.constant 0 : i32
    %c0_i32_0 = arith.constant 0 : i32
    return %arg0, %c0_i32, %arg1 : i32, i32, i32
  }
  func.func @transform_2(%arg0: i32, %arg1: i32) -> (i32, i32, i32) {
    %c0_i32 = arith.constant 0 : i32
    %c0_i32_0 = arith.constant 0 : i32
    return %arg0, %c0_i32, %arg1 : i32, i32, i32
  }
  func.func @transform_3(%arg0: i32, %arg1: i32) -> (i32, i32) {
    %c0_i32 = arith.constant 0 : i32
    %c0_i32_0 = arith.constant 0 : i32
    %c0_i32_1 = arith.constant 0 : i32
    return %c0_i32, %c0_i32_0 : i32, i32
  }
  func.func @transform_4(%arg0: i32, %arg1: i32) -> (i32, i32, i32) {
    %c0_i32 = arith.constant 0 : i32
    %c0_i32_0 = arith.constant 0 : i32
    %c0_i32_1 = arith.constant 0 : i32
    %c0_i32_2 = arith.constant 0 : i32
    return %c0_i32, %c0_i32_0, %c0_i32_1 : i32, i32, i32
  }
  func.func @transform_5(%arg0: i32, %arg1: i32) -> (i32, i32) {
    %c0_i32 = arith.constant 0 : i32
    %c0_i32_0 = arith.constant 0 : i32
    %c0_i32_1 = arith.constant 0 : i32
    return %c0_i32, %c0_i32_0 : i32, i32
  }
  func.func @transform_6(%arg0: i32, %arg1: i32) -> (i32, i32, i32) {
    %c0_i32 = arith.constant 0 : i32
    %c0_i32_0 = arith.constant 0 : i32
    return %arg0, %c0_i32, %arg1 : i32, i32, i32
  }
}

</mosaic_0001>

<llo_original>
// kernel: tpu_custom_call.1
$region0: #{tpu_custom_call.1}
  #allocation0 [shape = 'u32[]', space=smem, size = 0x4, offset = 0x4, fixed_abs, tag = 'smem constant byte address 0x4 - core index']
  #allocation1 [shape = 'u32[72,128]{1,0:T(1,128)}', space=vmem, size = 0x9000, scoped, tag = 'internal scratch']
  #allocation2 [shape = 'bf16[32,256]{1,0:T(8,128)(2,1)}', space=vmem, size = 0x4000, scoped, tag = 'scratch operand']
  %s0 = inlined_call_operand.vmem [shape: f32[2,16,256], index: 0, kind: input, shape index: {}]
  %s1 = inlined_call_operand.hbm [shape: f32[2,16,256], index: 1, kind: input, shape index: {}]
  %s2 = inlined_call_operand.hbm [shape: f32[2,16,256], index: 2, kind: input, shape index: {}]
  %s3 = inlined_call_operand.vmem [shape: bf16[8,32], index: 3, kind: input, shape index: {}]
  %s4 = inlined_call_operand.vmem [shape: f32[4,16,1], index: 4, kind: input, shape index: {}]
  %s5 = inlined_call_operand.vmem [shape: f32[8,1], index: 5, kind: input, shape index: {}]
  %s6 = inlined_call_operand.hbm [shape: f32[2,8,256], index: 6, kind: output, shape index: {}]
  %s7 = sld [smem:[#allocation0]]
  $region65: #{tpu_custom_call.1} parent=0
    _
  %s9 = ssub.s32 1, %s7
  %s10 = scalar_select 0, %s9, %s7
  $region1: #{tpu_custom_call.1} parent=0
    #allocation3 [shape = 'u8[32768]{0}', space=vmem, size = 0x8000, scoped, tag = 'input window, operand 1']
    #allocation4 [shape = 's32[2]{0}', space=sflag, size = 0x8, scoped, tag = 'scoped memory for tpu_custom_call.1']
    #allocation5 [shape = 's32[2]{0}', space=sflag, size = 0x8, scoped, tag = 'scoped memory for tpu_custom_call.1']
    #allocation6 [shape = 'u8[32768]{0}', space=vmem, size = 0x8000, scoped, tag = 'input window, operand 2']
    #allocation7 [shape = 's32[2]{0}', space=sflag, size = 0x8, scoped, tag = 'scoped memory for tpu_custom_call.1']
    #allocation8 [shape = 'u8[16384]{0}', space=vmem, size = 0x4000, scoped, tag = 'output window, operand 0']
    %11 = vsyncpa [#allocation4], 0
    %s12 = scalar_lea.sflag [#allocation4], 1
    %13 = vsyncpa %s12, 0
    %14 = vsyncpa [#allocation7], 0
    %s15 = scalar_lea.sflag [#allocation7], 1
    %16 = vsyncpa %s15, 0
    %17 = vsyncpa [#allocation5], 0
    %s18 = scalar_lea.sflag [#allocation5], 1
    %19 = vsyncpa %s18, 0
    loop: start=0, step=1, limit=4
    $region2: #{tpu_custom_call.1} parent=1 // loop_pre_header
      _
    $region3: #{tpu_custom_call.1} parent=1 // loop_header
      %s21 = sphi 0, %s25
      %p22 = scmp.ge.s32.totalorder %s21, 4
      %s28 = sphi 0, %s40
      %s29 = sphi 0, %s36
      %s30 = sphi 0, %s28
      %s31 = sphi 0, %s29
      %s32 = sphi 0, %s30
      %s33 = sphi 0, %s31
      %s45 = sphi 0, %s47
      %s48 = sphi 0, %s45
      %s49 = sphi 0, %s48
      %s65 = sphi 0, %s49
      %s73 = sphi 0, %s75
      %s76 = sphi 0, %s73
      %s77 = sphi 0, %s76
      %s93 = sphi 0, %s77
      %s101 = sphi 0, %s103
      %s104 = sphi 0, %s101
      %s105 = sphi 0, %s104
      %s121 = sphi 0, %s105
      %s125 = sphi 0, %s125
      %s127 = sphi 0, %s125
      %s128 = sphi 0, %s127
      %s142 = sphi 0, %s128
      %s146 = sphi 0, %s146
      %s148 = sphi 0, %s146
      %s149 = sphi 0, %s148
      %s163 = sphi 0, %s149
      %s167 = sphi 0, %s167
      %s169 = sphi 0, %s167
      %s170 = sphi 0, %s169
      %s184 = sphi 0, %s170
      %s192 = sphi 0, %s194
      %s195 = sphi 0, %s192
      %s196 = sphi 0, %s195
      %s212 = sphi 0, %s196
    $region4: #{tpu_custom_call.1} parent=1 // loop_header_branch
      %24 = sbr.rel (%p22) target = $region8
    $region5: #{tpu_custom_call.1} parent=1 // loop_body
      %s26 = ssub.s32 %s21, 1
      %s27 = ssub.s32 %s21, 2
      %s34 = sadd.s32 1, %s29
      %p35 = scmp.ge.s32.totalorder %s34, 1
      %s36 = scalar_select %p35, 0, %s34
      %s37 = sadd.s32 1, %s28
      %s38 = scalar_select %p35, %s37, %s28
      %p39 = scmp.ge.s32.totalorder %s38, 2
      %s40 = scalar_select %p39, 0, %s38
      %s41 = ssub.s32 %s28, %s40
      %s42 = ssub.s32 %s29, %s36
      %s43 = sor.u32 %s41, %s42
      %p44 = scmp.eq.s32.totalorder %s43, 0
      %s46 = sadd.s32 %s45, 1
      %s47 = scalar_select %p44, %s45, %s46
      %p50 = pneg %p44
      %p51 = scmp.eq.s32.totalorder %s21, 1
      %p52 = por %p50, %p51
      %p53 = scmp.ne.s32.totalorder %s45, %s48
      %p54 = scmp.eq.s32.totalorder %s21, 0
      %p55 = por %p53, %p54
      %p56 = scmp.ne.s32.totalorder %s45, %s48
      %p57 = scmp.eq.s32.totalorder %s26, 1
      %p58 = por %p56, %p57
      %p59 = scmp.ne.s32.totalorder %s48, %s49
      %p60 = scmp.eq.s32.totalorder %s26, 0
      %p61 = por %p59, %p60
      %p62 = scmp.ne.s32.totalorder %s48, %s49
      %p63 = scmp.eq.s32.totalorder %s27, 1
      %p64 = por %p62, %p63
      %p66 = scmp.ne.s32.totalorder %s49, %s65
      %p67 = scmp.eq.s32.totalorder %s27, 0
      %p68 = por %p66, %p67
      %s69 = ssub.s32 %s28, %s40
      %s70 = ssub.s32 %s29, %s36
      %s71 = sor.u32 %s69, %s70
      %p72 = scmp.eq.s32.totalorder %s71, 0
      %s74 = sadd.s32 %s73, 1
      %s75 = scalar_select %p72, %s73, %s74
      %p78 = pneg %p72
      %p79 = scmp.eq.s32.totalorder %s21, 1
      %p80 = por %p78, %p79
      %p81 = scmp.ne.s32.totalorder %s73, %s76
      %p82 = scmp.eq.s32.totalorder %s21, 0
      %p83 = por %p81, %p82
      %p84 = scmp.ne.s32.totalorder %s73, %s76
      %p85 = scmp.eq.s32.totalorder %s26, 1
      %p86 = por %p84, %p85
      %p87 = scmp.ne.s32.totalorder %s76, %s77
      %p88 = scmp.eq.s32.totalorder %s26, 0
      %p89 = por %p87, %p88
      %p90 = scmp.ne.s32.totalorder %s76, %s77
      %p91 = scmp.eq.s32.totalorder %s27, 1
      %p92 = por %p90, %p91
      %p94 = scmp.ne.s32.totalorder %s77, %s93
      %p95 = scmp.eq.s32.totalorder %s27, 0
      %p96 = por %p94, %p95
      %s97 = ssub.s32 %s28, %s40
      %s98 = ssub.s32 %s29, %s36
      %s99 = sor.u32 %s97, %s98
      %p100 = scmp.eq.s32.totalorder %s99, 0
      %s102 = sadd.s32 %s101, 1
      %s103 = scalar_select %p100, %s101, %s102
      %p106 = pneg %p100
      %p107 = scmp.eq.s32.totalorder %s21, 1
      %p108 = por %p106, %p107
      %p109 = scmp.ne.s32.totalorder %s101, %s104
      %p110 = scmp.eq.s32.totalorder %s21, 0
      %p111 = por %p109, %p110
      %p112 = scmp.ne.s32.totalorder %s101, %s104
      %p113 = scmp.eq.s32.totalorder %s26, 1
      %p114 = por %p112, %p113
      %p115 = scmp.ne.s32.totalorder %s104, %s105
      %p116 = scmp.eq.s32.totalorder %s26, 0
      %p117 = por %p115, %p116
      %p118 = scmp.ne.s32.totalorder %s104, %s105
      %p119 = scmp.eq.s32.totalorder %s27, 1
      %p120 = por %p118, %p119
      %p122 = scmp.ne.s32.totalorder %s105, %s121
      %p123 = scmp.eq.s32.totalorder %s27, 0
      %p124 = por %p122, %p123
      %s126 = sadd.s32 %s125, 1
      %p129 = scmp.eq.s32.totalorder %s21, 1
      %p130 = scmp.ne.s32.totalorder %s125, %s127
      %p131 = scmp.eq.s32.totalorder %s21, 0
      %p132 = por %p130, %p131
      %p133 = scmp.ne.s32.totalorder %s125, %s127
      %p134 = scmp.eq.s32.totalorder %s26, 1
      %p135 = por %p133, %p134
      %p136 = scmp.ne.s32.totalorder %s127, %s128
      %p137 = scmp.eq.s32.totalorder %s26, 0
      %p138 = por %p136, %p137
      %p139 = scmp.ne.s32.totalorder %s127, %s128
      %p140 = scmp.eq.s32.totalorder %s27, 1
      %p141 = por %p139, %p140
      %p143 = scmp.ne.s32.totalorder %s128, %s142
      %p144 = scmp.eq.s32.totalorder %s27, 0
      %p145 = por %p143, %p144
      %s147 = sadd.s32 %s146, 1
      %p150 = scmp.eq.s32.totalorder %s21, 1
      %p151 = scmp.ne.s32.totalorder %s146, %s148
      %p152 = scmp.eq.s32.totalorder %s21, 0
      %p153 = por %p151, %p152
      %p154 = scmp.ne.s32.totalorder %s146, %s148
      %p155 = scmp.eq.s32.totalorder %s26, 1
      %p156 = por %p154, %p155
      %p157 = scmp.ne.s32.totalorder %s148, %s149
      %p158 = scmp.eq.s32.totalorder %s26, 0
      %p159 = por %p157, %p158
      %p160 = scmp.ne.s32.totalorder %s148, %s149
      %p161 = scmp.eq.s32.totalorder %s27, 1
      %p162 = por %p160, %p161
      %p164 = scmp.ne.s32.totalorder %s149, %s163
      %p165 = scmp.eq.s32.totalorder %s27, 0
      %p166 = por %p164, %p165
      %s168 = sadd.s32 %s167, 1
      %p171 = scmp.eq.s32.totalorder %s21, 1
      %p172 = scmp.ne.s32.totalorder %s167, %s169
      %p173 = scmp.eq.s32.totalorder %s21, 0
      %p174 = por %p172, %p173
      %p175 = scmp.ne.s32.totalorder %s167, %s169
      %p176 = scmp.eq.s32.totalorder %s26, 1
      %p177 = por %p175, %p176
      %p178 = scmp.ne.s32.totalorder %s169, %s170
      %p179 = scmp.eq.s32.totalorder %s26, 0
      %p180 = por %p178, %p179
      %p181 = scmp.ne.s32.totalorder %s169, %s170
      %p182 = scmp.eq.s32.totalorder %s27, 1
      %p183 = por %p181, %p182
      %p185 = scmp.ne.s32.totalorder %s170, %s184
      %p186 = scmp.eq.s32.totalorder %s27, 0
      %p187 = por %p185, %p186
      %s188 = ssub.s32 %s28, %s40
      %s189 = ssub.s32 %s29, %s36
      %s190 = sor.u32 %s188, %s189
      %p191 = scmp.eq.s32.totalorder %s190, 0
      %s193 = sadd.s32 %s192, 1
      %s194 = scalar_select %p191, %s192, %s193
      %p197 = pneg %p191
      %p198 = scmp.eq.s32.totalorder %s21, 1
      %p199 = por %p197, %p198
      %p200 = scmp.ne.s32.totalorder %s192, %s195
      %p201 = scmp.eq.s32.totalorder %s21, 0
      %p202 = por %p200, %p201
      %p203 = scmp.ne.s32.totalorder %s192, %s195
      %p204 = scmp.eq.s32.totalorder %s26, 1
      %p205 = por %p203, %p204
      %p206 = scmp.ne.s32.totalorder %s195, %s196
      %p207 = scmp.eq.s32.totalorder %s26, 0
      %p208 = por %p206, %p207
      %p209 = scmp.ne.s32.totalorder %s195, %s196
      %p210 = scmp.eq.s32.totalorder %s27, 1
      %p211 = por %p209, %p210
      %p213 = scmp.ne.s32.totalorder %s196, %s212
      %p214 = scmp.eq.s32.totalorder %s27, 0
      %p215 = por %p213, %p214
      %p216 = scmp.le.s32.totalorder 1, %s21
      %p217 = scmp.lt.s32.totalorder %s21, 3
      %p218 = pnand %p216, %p217
      %p219 = pneg %p218
      // Predicated region
      $region9: #{tpu_custom_call.1} parent=5 // pred_check
        _
      $region10: #{tpu_custom_call.1} parent=5 // pred_check_branch
        %221 = sbr.rel (%p218) target = $region12
      $region11: #{tpu_custom_call.1} parent=5 // pred_region
        %s222 = ssub.s32 %s21, 1
        // Predicated region
        $region13: #{tpu_custom_call.1} parent=11 // pred_check
          %p223 = pneg %p138
        $region14: #{tpu_custom_call.1} parent=11 // pred_check_branch
          %225 = sbr.rel (%p223) target = $region16
        $region15: #{tpu_custom_call.1} parent=11 // pred_region
          _
        $region16: #{tpu_custom_call.1} parent=11 // pred_fallthru
          _
        // Predicated region
        $region17: #{tpu_custom_call.1} parent=11 // pred_check
          %p226 = pneg %p159
        $region18: #{tpu_custom_call.1} parent=11 // pred_check_branch
          %228 = sbr.rel (%p226) target = $region20
        $region19: #{tpu_custom_call.1} parent=11 // pred_region
          _
        $region20: #{tpu_custom_call.1} parent=11 // pred_fallthru
          _
        // Predicated region
        $region21: #{tpu_custom_call.1} parent=11 // pred_check
          %p229 = pneg %p180
        $region22: #{tpu_custom_call.1} parent=11 // pred_check_branch
          %231 = sbr.rel (%p229) target = $region24
        $region23: #{tpu_custom_call.1} parent=11 // pred_region
          _
        $region24: #{tpu_custom_call.1} parent=11 // pred_fallthru
          _
      $region12: #{tpu_custom_call.1} parent=5 // pred_fallthru
        _
      %p232 = scmp.lt.s32.totalorder %s21, 2
      // Predicated region
      $region25: #{tpu_custom_call.1} parent=5 // pred_check
        %p233 = pneg %p232
      $region26: #{tpu_custom_call.1} parent=5 // pred_check_branch
        %235 = sbr.rel (%p233) target = $region28
      $region27: #{tpu_custom_call.1} parent=5 // pred_region
        // Predicated region
        $region29: #{tpu_custom_call.1} parent=27 // pred_check
          %p236 = pneg %p55
        $region30: #{tpu_custom_call.1} parent=27 // pred_check_branch
          %238 = sbr.rel (%p236) target = $region32
        $region31: #{tpu_custom_call.1} parent=27 // pred_region
          %s239 = smul.u32 2, %s29
          %p240 = scmp.lt.s32.totalorder %s28, 1
          %s241 = scalar_select %p240, %s28, 1
          %p242 = scmp.lt.s32.totalorder %s239, 1
          %s243 = scalar_select %p242, %s239, 1
          %s244 = smul.addr %s241, 4
          %s245 = sadd.s32 %s243, %s244
          %s246 = smul.addr %s245, 8
          %s247 = scalar_lea.vmem %s0, %s246
          %s248 = smul.u32 2, %s29
        $region32: #{tpu_custom_call.1} parent=27 // pred_fallthru
          _
        // Predicated region
        $region33: #{tpu_custom_call.1} parent=27 // pred_check
          %p249 = pneg %p83
        $region34: #{tpu_custom_call.1} parent=27 // pred_check_branch
          %251 = sbr.rel (%p249) target = $region36
        $region35: #{tpu_custom_call.1} parent=27 // pred_region
          %s252 = sand.u32 %s73, 1
          %s253 = scalar_lea.sflag [#allocation4], %s252
          %s254 = sand.u32 %s73, 1
          %s255 = smul.addr %s254, 32
          %s256 = scalar_lea.vmem [#allocation3], %s255
          %s257 = smul.u32 2, %s29
          %259 = vsyncadd %s253, 0
          %s260 = smul.addr %s28, 4
          %s261 = sadd.s32 %s257, %s260
          %s262 = smul.addr %s261, 8
          %s263 = scalar_lea.hbm %s1, %s262
          %s264 = sshll.u32 %s263, 4
          %s265 = int_to_ptr.hbm [resolvable:$true] %s264
          %s266 = sshll.u32 %s256, 4
          %s267 = int_to_ptr.vmem [resolvable:$true] %s266
          %272 = dma.hbm_to_vmem [thread:$0]  %s265, 512, %s267, %s253, 256, 256, 16
        $region36: #{tpu_custom_call.1} parent=27 // pred_fallthru
          _
        // Predicated region
        $region37: #{tpu_custom_call.1} parent=27 // pred_check
          %p273 = pneg %p111
        $region38: #{tpu_custom_call.1} parent=27 // pred_check_branch
          %275 = sbr.rel (%p273) target = $region40
        $region39: #{tpu_custom_call.1} parent=27 // pred_region
          %s276 = sand.u32 %s101, 1
          %s277 = scalar_lea.sflag [#allocation7], %s276
          %s278 = sand.u32 %s101, 1
          %s279 = smul.addr %s278, 32
          %s280 = scalar_lea.vmem [#allocation6], %s279
          %s281 = smul.u32 2, %s29
          %283 = vsyncadd %s277, 0
          %s284 = smul.addr %s28, 4
          %s285 = sadd.s32 %s281, %s284
          %s286 = smul.addr %s285, 8
          %s287 = scalar_lea.hbm %s2, %s286
          %s288 = sshll.u32 %s287, 4
          %s289 = int_to_ptr.hbm [resolvable:$true] %s288
          %s290 = sshll.u32 %s280, 4
          %s291 = int_to_ptr.vmem [resolvable:$true] %s290
          %296 = dma.hbm_to_vmem [thread:$0]  %s289, 512, %s291, %s277, 256, 256, 16
        $region40: #{tpu_custom_call.1} parent=27 // pred_fallthru
          _
      $region28: #{tpu_custom_call.1} parent=5 // pred_fallthru
        _
      %p297 = scmp.le.s32.totalorder 1, %s21
      %p298 = scmp.lt.s32.totalorder %s21, 3
      %p299 = pnand %p297, %p298
      %p300 = pneg %p299
      // Predicated region
      $region41: #{tpu_custom_call.1} parent=5 // pred_check
        _
      $region42: #{tpu_custom_call.1} parent=5 // pred_check_branch
        %302 = sbr.rel (%p299) target = $region44
      $region43: #{tpu_custom_call.1} parent=5 // pred_region
        %s303 = ssub.s32 %s21, 1
        %s304 = sand.u32 %s76, 1
        %s305 = scalar_lea.sflag [#allocation4], %s304
        %s306 = sand.u32 %s76, 1
        %s307 = smul.addr %s306, 32
        %s308 = scalar_lea.vmem [#allocation3], %s307
        // Predicated region
        $region45: #{tpu_custom_call.1} parent=43 // pred_check
          %p309 = pneg %p89
        $region46: #{tpu_custom_call.1} parent=43 // pred_check_branch
          %311 = sbr.rel (%p309) target = $region48
        $region47: #{tpu_custom_call.1} parent=43 // pred_region
          %313 = dma.done %s305, 512
        $region48: #{tpu_custom_call.1} parent=43 // pred_fallthru
          _
        %s314 = sand.u32 %s104, 1
        %s315 = scalar_lea.sflag [#allocation7], %s314
        %s316 = sand.u32 %s104, 1
        %s317 = smul.addr %s316, 32
        %s318 = scalar_lea.vmem [#allocation6], %s317
        // Predicated region
        $region49: #{tpu_custom_call.1} parent=43 // pred_check
          %p319 = pneg %p117
        $region50: #{tpu_custom_call.1} parent=43 // pred_check_branch
          %321 = sbr.rel (%p319) target = $region52
        $region51: #{tpu_custom_call.1} parent=43 // pred_region
          %323 = dma.done %s315, 512
        $region52: #{tpu_custom_call.1} parent=43 // pred_fallthru
          _
        %s324 = smul.u32 2, %s31
        %p325 = scmp.lt.s32.totalorder %s30, 1
        %s326 = scalar_select %p325, %s30, 1
        %p327 = scmp.lt.s32.totalorder %s324, 1
        %s328 = scalar_select %p327, %s324, 1
        %s329 = smul.addr %s326, 4
        %s330 = sadd.s32 %s328, %s329
        %s331 = smul.addr %s330, 8
        %s332 = scalar_lea.vmem %s0, %s331
        %p333 = pneg %p61
        %p334 = pneg %p58
        %s335 = sand.u32 %s76, 1
        %s336 = scalar_lea.sflag [#allocation4], %s335
        %s337 = sand.u32 %s76, 1
        %s338 = smul.addr %s337, 32
        %s339 = scalar_lea.vmem [#allocation3], %s338
        %p340 = pneg %p89
        %p341 = pneg %p86
        %s342 = sand.u32 %s104, 1
        %s343 = scalar_lea.sflag [#allocation7], %s342
        %s344 = sand.u32 %s104, 1
        %s345 = smul.addr %s344, 32
        %s346 = scalar_lea.vmem [#allocation6], %s345
        %p347 = pneg %p117
        %p348 = pneg %p114
        %p349 = pneg %p138
        %p350 = pneg %p135
        %p351 = pneg %p159
        %p352 = pneg %p156
        %p353 = pneg %p180
        %p354 = pneg %p177
        %p355 = pneg %p208
        %p356 = pneg %p205
        %s357 = sand.u32 %s195, 1
        %s358 = scalar_lea.sflag [#allocation5], %s357
        %s359 = sand.u32 %s195, 1
        %s360 = smul.addr %s359, 16
        %s361 = scalar_lea.vmem [#allocation8], %s360
        %s362 = smul.u32 2, %s31
        %p363 = scmp.lt.s32.totalorder %s30, 1
        %s364 = scalar_select %p363, %s30, 1
        %p365 = scmp.lt.s32.totalorder %s362, 1
        %s366 = scalar_select %p365, %s362, 1
        %s367 = smul.addr %s364, 4
        %s368 = sadd.s32 %s366, %s367
        %s369 = smul.addr %s368, 8
        %s370 = scalar_lea.vmem %s0, %s369
        %s371 = smul.u32 2, %s31
        %s372 = smul.u32 2, %s31
        %s373 = smul.u32 2, %s31
        %s374 = smul.u32 2, %s31
        %v376 = vld [vmem:[%s370] sm:$0xff]
        %v377 = vld [vmem:[%s370 + $0x8] sm:$0xff]
        %v378 = vld [vmem:[%s370 + $0x10] sm:$0xff]
        %v379 = vld [vmem:[%s370 + $0x18] sm:$0xff]
        %v380 = vld [vmem:[%s308] sm:$0xff]
        %v381 = vld [vmem:[%s308 + $0x8] sm:$0xff]
        %v382 = vld [vmem:[%s308 + $0x10] sm:$0xff]
        %v383 = vld [vmem:[%s308 + $0x18] sm:$0xff]
        %v384 = vld [vmem:[%s318] sm:$0xff]
        %v385 = vld [vmem:[%s318 + $0x8] sm:$0xff]
        %v386 = vld [vmem:[%s318 + $0x10] sm:$0xff]
        %v387 = vld [vmem:[%s318 + $0x18] sm:$0xff]
        %v388 = vld [vmem:[%s4] sm:$0xff]
        %v389 = vld [vmem:[%s4 + $0x8] sm:$0xff]
        %s390 = scalar_lea.vmem %s4, 16
        %v391 = vld [vmem:[%s390] sm:$0xff]
        %v392 = vld [vmem:[%s390 + $0x8] sm:$0xff]
        %s393 = scalar_lea.vmem %s4, 32
        %v394 = vld [vmem:[%s393] sm:$0xff]
        %v395 = vld [vmem:[%s393 + $0x8] sm:$0xff]
        %s396 = scalar_lea.vmem %s4, 48
        %v397 = vld [vmem:[%s396] sm:$0xff]
        %v398 = vld [vmem:[%s396 + $0x8] sm:$0xff]
        %v399 = vsub.f32 0.0, %v384
        %v400 = vsub.f32 0.0, %v385
        %v401 = vsub.f32 0.0, %v386
        %v402 = vsub.f32 0.0, %v387
        %v403 = vmul.f32 %v399, 1.442695
        %v404 = vpow.pop %v403
        %v405 = vmul.f32 %v400, 1.442695
        %v406 = vpow.pop %v405
        %v407 = vmul.f32 %v401, 1.442695
        %v408 = vpow.pop %v407
        %v409 = vmul.f32 %v402, 1.442695
        %v410 = vpow.pop %v409
        %v411 = vadd.f32 %v404, 1.0
        %v412 = vadd.f32 %v406, 1.0
        %v413 = vadd.f32 %v408, 1.0
        %v414 = vadd.f32 %v410, 1.0
        %v415 = vrcp.pop %v411
        %v416 = vrcp.pop %v412
        %v417 = vrcp.pop %v413
        %v418 = vrcp.pop %v414
        %v419 = vsub.f32 1.0, %v415
        %v420 = vsub.f32 1.0, %v416
        %v421 = vsub.f32 1.0, %v417
        %v422 = vsub.f32 1.0, %v418
        %v423 = vmul.f32 %v419, %v380
        %v424 = vmul.f32 %v420, %v381
        %v425 = vmul.f32 %v421, %v382
        %v426 = vmul.f32 %v422, %v383
        %v427 = vadd.f32 %v423, %v376
        %v428 = vadd.f32 %v424, %v377
        %v429 = vadd.f32 %v425, %v378
        %v430 = vadd.f32 %v426, %v379
        %v431 = vmul.f32 %v415, %v376
        %v432 = vmul.f32 %v416, %v377
        %v433 = vmul.f32 %v417, %v378
        %v434 = vmul.f32 %v418, %v379
        %v435 = vadd.f32 %v380, %v431
        %v436 = vadd.f32 %v381, %v432
        %v437 = vadd.f32 %v382, %v433
        %v438 = vadd.f32 %v383, %v434
        %440 = vset.pattern.permute.xlu0 0
        %441 = vperm.xlu0 %440, %v388
        %v442 = vpop.permute.xlu0 %441
        %445 = vset.pattern.permute.xlu0 0
        %446 = vperm.xlu0 %445, %v389
        %v447 = vpop.permute.xlu0 %446
        %v449 = vmul.f32 %v442, %v427
        %v450 = vmul.f32 %v442, %v428
        %v451 = vmul.f32 %v447, %v429
        %v452 = vmul.f32 %v447, %v430
        %454 = vset.pattern.permute.xlu0 0
        %455 = vperm.xlu0 %454, %v391
        %v456 = vpop.permute.xlu0 %455
        %459 = vset.pattern.permute.xlu0 0
        %460 = vperm.xlu0 %459, %v392
        %v461 = vpop.permute.xlu0 %460
        %v463 = vadd.f32 %v449, %v456
        %v464 = vadd.f32 %v450, %v456
        %v465 = vadd.f32 %v451, %v461
        %v466 = vadd.f32 %v452, %v461
        %v467 = vmax.f32 %v463, 0.0
        %v468 = vmax.f32 %v464, 0.0
        %v469 = vmax.f32 %v465, 0.0
        %v470 = vmax.f32 %v466, 0.0
        %472 = vset.pattern.permute.xlu0 0
        %473 = vperm.xlu0 %472, %v394
        %v474 = vpop.permute.xlu0 %473
        %477 = vset.pattern.permute.xlu0 0
        %478 = vperm.xlu0 %477, %v395
        %v479 = vpop.permute.xlu0 %478
        %v481 = vmul.f32 %v474, %v435
        %v482 = vmul.f32 %v474, %v436
        %v483 = vmul.f32 %v479, %v437
        %v484 = vmul.f32 %v479, %v438
        %486 = vset.pattern.permute.xlu0 0
        %487 = vperm.xlu0 %486, %v397
        %v488 = vpop.permute.xlu0 %487
        %491 = vset.pattern.permute.xlu0 0
        %492 = vperm.xlu0 %491, %v398
        %v493 = vpop.permute.xlu0 %492
        %v495 = vadd.f32 %v481, %v488
        %v496 = vadd.f32 %v482, %v488
        %v497 = vadd.f32 %v483, %v493
        %v498 = vadd.f32 %v484, %v493
        %v499 = vmax.f32 %v495, 0.0
        %v500 = vmax.f32 %v496, 0.0
        %v501 = vmax.f32 %v497, 0.0
        %v502 = vmax.f32 %v498, 0.0
        %v503 = vpack.c.bf16 %v468, %v467
        %v504 = vpack.c.bf16 %v470, %v469
        %505 = vst [vmem:[#allocation2] sm:$0xff] %v503
        %506 = vst [vmem:[#allocation2 + $0x8] sm:$0xff] %v504
        %v507 = vpack.c.bf16 %v500, %v499
        %v508 = vpack.c.bf16 %v502, %v501
        %509 = vst [vmem:[#allocation2 + $0x10] sm:$0xff] %v507
        %510 = vst [vmem:[#allocation2 + $0x18] sm:$0xff] %v508
        %v511 = vld [vmem:[%s3] sm:$0xf]
        %v512 = vld [vmem:[#allocation2] sm:$0xff]
        %v513 = vld [vmem:[#allocation2 + $0x8] sm:$0xff]
        %v514 = vld [vmem:[#allocation2 + $0x10] sm:$0xff]
        %v515 = vld [vmem:[#allocation2 + $0x18] sm:$0xff]
        %v516 = vld [vmem:[%s5] sm:$0xff]
        %518 = vset.pattern.permute.xlu0 0
        %519 = vperm.xlu0 %518, %v516
        %v520 = vpop.permute.xlu0 %519
        %v526 = vunpack.c.l.b16 %v512
        %v527 = vunpack.c.h.b16 %v512
        %v528 = vunpack.c.l.b16 %v513
        %v529 = vunpack.c.h.b16 %v513
        %v530 = vunpack.c.l.b16 %v514
        %v531 = vunpack.c.h.b16 %v514
        %v532 = vunpack.c.l.b16 %v515
        %v533 = vunpack.c.h.b16 %v515
        %v534 = vpack.c.b16 %v528, %v526
        %v535 = vpack.c.b16 %v529, %v527
        %v536 = vpack.c.b16 %v532, %v530
        %v537 = vpack.c.b16 %v533, %v531
        %vm542 = vcmask 261120
        %v544 = vsel %vm542, %v511, 0
        %546 = vmatpush.bf16.msra.mxu0 0
        %547 = vmatpush.bf16.msra.mxu0 0
        %548 = vmatpush.bf16.msra.mxu0 0
        %549 = vmatpush.bf16.msra.mxu0 0
        %550 = vmatpush.bf16.msra.mxu0 0
        %551 = vmatpush.bf16.msra.mxu0 0
        %552 = vmatpush.bf16.msra.mxu0 %v536
        %553 = vmatpush.bf16.msra.mxu0 %v534
        %554 = vmatmul.bf16.gmra.mxu0 %v544
        %v555 = vpop.f32.mrf.mxu0
        %v556 = vadd.f32 %v520, %v555
        %v557 = vpop.f32.mrf.mxu0
        %558 = vdwg.mxu0
        %559 = vmatpush.bf16.msra.mxu0 0
        %560 = vmatpush.bf16.msra.mxu0 0
        %561 = vmatpush.bf16.msra.mxu0 0
        %562 = vmatpush.bf16.msra.mxu0 0
        %563 = vmatpush.bf16.msra.mxu0 0
        %564 = vmatpush.bf16.msra.mxu0 0
        %565 = vmatpush.bf16.msra.mxu0 %v537
        %566 = vmatpush.bf16.msra.mxu0 %v535
        %567 = vmatmul.bf16.gmra.mxu0 %v544
        %v568 = vpop.f32.mrf.mxu0
        %v569 = vadd.f32 %v520, %v568
        %v570 = vpop.f32.mrf.mxu0
        %571 = vdwg.mxu0
        %572 = vst [vmem:[%s361] sm:$0xff] %v556
        %573 = vst [vmem:[%s361 + $0x8] sm:$0xff] %v569
        %s574 = sand.u32 %s195, 1
        %s575 = scalar_lea.sflag [#allocation5], %s574
        %s576 = sand.u32 %s195, 1
        %s577 = smul.addr %s576, 16
        %s578 = scalar_lea.vmem [#allocation8], %s577
        // Predicated region
        $region53: #{tpu_custom_call.1} parent=43 // pred_check
          %p579 = pneg %p205
        $region54: #{tpu_custom_call.1} parent=43 // pred_check_branch
          %581 = sbr.rel (%p579) target = $region56
        $region55: #{tpu_custom_call.1} parent=43 // pred_region
          %s582 = smul.u32 2, %s31
          %584 = vsyncadd %s575, 0
          %s585 = smul.addr %s30, 2
          %s586 = sadd.s32 %s582, %s585
          %s587 = smul.addr %s586, 8
          %s588 = scalar_lea.hbm %s6, %s587
          %s590 = sshll.u32 %s578, 4
          %s591 = int_to_ptr.vmem [resolvable:$true] %s590
          %s592 = sshll.u32 %s588, 4
          %s593 = int_to_ptr.hbm [resolvable:$true] %s592
          %595 = dma.vmem_to_hbm [thread:$0]  %s591, 256, %s593, %s575
        $region56: #{tpu_custom_call.1} parent=43 // pred_fallthru
          _
      $region44: #{tpu_custom_call.1} parent=5 // pred_fallthru
        _
      %p596 = scmp.le.s32.totalorder 2, %s21
      // Predicated region
      $region57: #{tpu_custom_call.1} parent=5 // pred_check
        %p597 = pneg %p596
      $region58: #{tpu_custom_call.1} parent=5 // pred_check_branch
        %599 = sbr.rel (%p597) target = $region60
      $region59: #{tpu_custom_call.1} parent=5 // pred_region
        %s600 = ssub.s32 %s21, 2
        // Predicated region
        $region61: #{tpu_custom_call.1} parent=59 // pred_check
          %p601 = pneg %p211
        $region62: #{tpu_custom_call.1} parent=59 // pred_check_branch
          %603 = sbr.rel (%p601) target = $region64
        $region63: #{tpu_custom_call.1} parent=59 // pred_region
          %s604 = sand.u32 %s196, 1
          %s605 = scalar_lea.sflag [#allocation5], %s604
          %s606 = sand.u32 %s196, 1
          %s607 = smul.addr %s606, 16
          %s608 = scalar_lea.vmem [#allocation8], %s607
          %610 = dma.done %s605, 256
        $region64: #{tpu_custom_call.1} parent=59 // pred_fallthru
          _
      $region60: #{tpu_custom_call.1} parent=5 // pred_fallthru
        _
    $region6: #{tpu_custom_call.1} parent=1 // loop_footer
      %s25 = sadd.s32 1, %s21
    $region7: #{tpu_custom_call.1} parent=1 // loop_footer_branch
      %20 = sbr.rel target = $region3
    $region8: #{tpu_custom_call.1} parent=1 // loop_exit
      _
    %611 = vsyncpa [#allocation4], 1
    %s612 = scalar_lea.sflag [#allocation4], 1
    %613 = vsyncpa %s612, 1
    %614 = vsyncpa [#allocation7], 1
    %s615 = scalar_lea.sflag [#allocation7], 1
    %616 = vsyncpa %s615, 1
    %617 = vsyncpa [#allocation5], 1
    %s618 = scalar_lea.sflag [#allocation5], 1
    %619 = vsyncpa %s618, 1

</llo_original>
